<compile_context>
chip_gen: v7x
topology: tpu7x:2x2x1
jax: 0.10.0
libtpu: 0.0.40
codegen_flags: <defaults>
</compile_context>

<pallas_src>
import math

import jax
import jax.numpy as jnp
from jax.experimental import pallas as pl
from jax.experimental.pallas import tpu as pltpu

# ----------------------------- configuration -------------------------------
HIDDEN = 32        # config.hidden_size
N_HEADS_Q = 4      # config.n_heads
N_KV_HEADS = 2     # config.n_kv_heads
HEAD_DIM = HIDDEN // N_HEADS_Q          # 8
N_REP = N_HEADS_Q // N_KV_HEADS         # 2
ROPE_THETA = 10000.0

BATCH = 2
SEQ = 8
START_POS = 0
TOTAL = START_POS + SEQ                 # key length

QD = N_HEADS_Q * HEAD_DIM               # 32
KD = N_KV_HEADS * HEAD_DIM              # 16
W_QK = 2 * QD                           # width of [q | k_repeated] = 64


# ------------------------------- kernel ------------------------------------
def fused_attention_kernel(x_ref, wqkv_ref, wo_ref, rot_ref, cossin_ref, out_ref):
    """Single-step kernel, both batch elements handled in one invocation.

    x_ref     : (B*S, HIDDEN)          bf16
    wqkv_ref  : (HIDDEN, 3*QD)         bf16  [wq/sqrt(D) | wk repeated | wv repeated]
    wo_ref    : (QD, HIDDEN)           bf16
    rot_ref   : (2*QD, 2*QD)           bf16  block-diag rotate-half signed permutation
    cossin_ref: (B*S, 4*QD)            f32   [cos tiled | sin tiled]
    out_ref   : (B*S, HIDDEN)          f32
    """
    f32, bf16 = jnp.float32, jnp.bfloat16
    S, T, D, Hq = SEQ, TOTAL, HEAD_DIM, N_HEADS_Q

    x = x_ref[...]                                               # (B*S, H) bf16

    # --- fused QKV projection (q-scale and GQA kv-repeat folded into weights)
    xqkv = jnp.dot(x, wqkv_ref[...], preferred_element_type=f32)  # (B*S, 3*QD)

    # --- RoPE applied once to [q | k_rep] (rotate_half == @ rot, MXU) --------
    qk = xqkv[:, :W_QK]                                          # (B*S, 64) f32
    rotated = jnp.dot(qk.astype(bf16), rot_ref[...], preferred_element_type=f32)
    cos = cossin_ref[:, :W_QK]
    sin = cossin_ref[:, W_QK:]
    qk = qk * cos + rotated * sin                                # f32 elementwise
    xv = xqkv[:, W_QK:]                                          # (B*S, QD) f32

    # --- in-kernel constants (no DMAs, no int div/mod needed) ----------------
    # block-diagonal head selector: row h*S+s, col c -> keep iff c in head h
    col = jax.lax.broadcasted_iota(jnp.int32, (S, QD), 1)
    blk = jnp.concatenate(
        [(col >= h * D) & (col < (h + 1) * D) for h in range(Hq)], axis=0)  # (Hq*S, QD)
    # causal additive mask, replicated per head along sublanes
    qpos = jax.lax.broadcasted_iota(jnp.int32, (S, T), 0)
    kpos = jax.lax.broadcasted_iota(jnp.int32, (S, T), 1)
    base_mask = jnp.where(kpos <= qpos + START_POS, 0.0, -1e9).astype(f32)
    causal = jnp.concatenate([base_mask] * Hq, axis=0)           # (Hq*S, T)

    outs = []
    for b in range(BATCH):                                       # static unroll
        xq_b = qk[b * S:(b + 1) * S, :QD]                        # (S, QD)  f32
        xk_b = qk[b * S:(b + 1) * S, QD:W_QK].astype(bf16)       # (S, QD)  bf16
        xv_b = xv[b * S:(b + 1) * S, :].astype(bf16)             # (S, QD)  bf16

        # Pack the Hq per-head query blocks into one block-diagonal operand
        # -> one MXU matmul for all heads instead of Hq tiny (8x8) matmuls.
        qbd = jnp.where(blk, jnp.concatenate([xq_b] * Hq, axis=0),
                        0.0).astype(bf16)                        # (Hq*S, QD)

        # scores[h*S + s, t] = q_h[s] . k_h[t]   (1/sqrt(D) folded into wq)
        scores = jax.lax.dot_general(
            qbd, xk_b, (((1,), (1,)), ((), ())),
            preferred_element_type=f32)                          # (Hq*S, T)
        scores = scores + causal

        # softmax over key positions (last/lane axis -> no relayout)
        m = jnp.max(scores, axis=-1, keepdims=True)
        p = jnp.exp(scores - m)
        p = p * pl.reciprocal(jnp.sum(p, axis=-1, keepdims=True), approx=True)

        # weighted values; only own-head (block-diagonal) columns are valid
        pv = jnp.dot(p.astype(bf16), xv_b, preferred_element_type=f32)  # (Hq*S, QD)
        pv = jnp.where(blk, pv, 0.0)
        # collapse head blocks: o[s, h*D + d] = pv[h*S + s, h*D + d]
        o_b = pv[0:S]
        for h in range(1, Hq):
            o_b = o_b + pv[h * S:(h + 1) * S]                    # (S, QD)
        outs.append(o_b)

    o_all = jnp.concatenate(outs, axis=0).astype(bf16)           # (B*S, QD)
    out_ref[...] = jnp.dot(o_all, wo_ref[...], preferred_element_type=f32)


# --------------------------- weight / table prep ----------------------------
def prepare_params(wq, wk, wv, wo, cos, sin):
    """One-time prep (outside the jitted hot path): fuse QKV, fold 1/sqrt(D)
    into wq, fold GQA repeat_kv into the kv weight columns, build the joint
    RoPE rotation + packed cos/sin table, cast matmul operands to bf16."""
    f32 = lambda a: a.astype(jnp.float32)
    D = HEAD_DIM
    scale = 1.0 / math.sqrt(D)

    def repeat_kv_cols(w):                                       # (H, KD) -> (H, QD)
        w = f32(w)
        return jnp.concatenate(
            [w[:, (h // N_REP) * D:((h // N_REP) + 1) * D] for h in range(N_HEADS_Q)],
            axis=1)

    wqkv = jnp.concatenate([f32(wq) * scale, repeat_kv_cols(wk), repeat_kv_cols(wv)],
                           axis=1).astype(jnp.bfloat16)          # (H, 3*QD)

    # rotate_half(t) == t @ p (signed permutation); block-diag over q + k heads
    half = D // 2
    p = jnp.zeros((D, D), jnp.float32)
    p = p.at[jnp.arange(half) + half, jnp.arange(half)].set(-1.0)
    p = p.at[jnp.arange(half), jnp.arange(half) + half].set(1.0)
    rot = jnp.kron(jnp.eye(2 * N_HEADS_Q, dtype=jnp.float32), p).astype(jnp.bfloat16)

    # cos/sin tiled over (q heads + repeated k heads) and over batch rows,
    # packed into a single table: (B*S, 4*QD) = (16, 128)
    cos_t = jnp.tile(f32(cos), (BATCH, 2 * N_HEADS_Q))
    sin_t = jnp.tile(f32(sin), (BATCH, 2 * N_HEADS_Q))
    cossin = jnp.concatenate([cos_t, sin_t], axis=1)

    return wqkv, wo.astype(jnp.bfloat16), rot, cossin


# ------------------------------- wrapper ------------------------------------
@jax.jit
def fused_attention(x_f16, wqkv, wo, rot, cossin):
    """x_f16: (B, S, HIDDEN) float16 -> (B, S, HIDDEN) float16."""
    B, S, H = x_f16.shape
    x2d = x_f16.astype(jnp.bfloat16).reshape(B * S, H)

    out = pl.pallas_call(
        fused_attention_kernel,
        out_shape=jax.ShapeDtypeStruct((B * S, H), jnp.float32),
        grid_spec=pltpu.PrefetchScalarGridSpec(
            num_scalar_prefetch=0,
            grid=(1,),
            in_specs=[
                pl.BlockSpec((B * S, H), lambda i: (0, 0)),      # x (bf16)
                pl.BlockSpec(wqkv.shape, lambda i: (0, 0)),      # fused W_qkv (bf16)
                pl.BlockSpec(wo.shape, lambda i: (0, 0)),        # wo (bf16)
                pl.BlockSpec(rot.shape, lambda i: (0, 0)),       # joint RoPE rotation
                pl.BlockSpec(cossin.shape, lambda i: (0, 0)),    # packed cos|sin
            ],
            out_specs=pl.BlockSpec((B * S, H), lambda i: (0, 0)),
        ),
        compiler_params=pltpu.CompilerParams(
            dimension_semantics=("arbitrary",)),
        cost_estimate=pl.CostEstimate(flops=340_000, transcendentals=512,
                                      bytes_accessed=28_000),
    )(x2d, wqkv, wo, rot, cossin)
    return out.reshape(B, S, H).astype(jnp.float16)


# --------------------------- pure-JAX reference ------------------------------
def reference(x_f16, wq, wk, wv, wo, cos, sin, mask):
    x = x_f16.astype(jnp.float32)
    B, S, H = x.shape
    xq = (x @ wq.astype(jnp.float32)).reshape(B, S, N_HEADS_Q, HEAD_DIM)
    xk = (x @ wk.astype(jnp.float32)).reshape(B, S, N_KV_HEADS, HEAD_DIM)
    xv = (x @ wv.astype(jnp.float32)).reshape(B, S, N_KV_HEADS, HEAD_DIM)

    def rot(t):
        half = HEAD_DIM // 2
        return jnp.concatenate([-t[..., half:], t[..., :half]], axis=-1)

    c = cos.astype(jnp.float32)[None, :, None, :]
    s = sin.astype(jnp.float32)[None, :, None, :]
    xq = xq * c + rot(xq) * s
    xk = xk * c + rot(xk) * s

    keys = jnp.repeat(xk, N_REP, axis=2)
    vals = jnp.repeat(xv, N_REP, axis=2)

    q = xq.transpose(0, 2, 1, 3)
    k = keys.transpose(0, 2, 1, 3)
    v = vals.transpose(0, 2, 1, 3)
    scores = q @ k.transpose(0, 1, 3, 2) / math.sqrt(HEAD_DIM)
    scores = scores + mask.astype(jnp.float32)[None, None]
    p = jax.nn.softmax(scores, axis=-1)
    o = (p @ v).transpose(0, 2, 1, 3).reshape(B, S, -1)
    return (o @ wo.astype(jnp.float32)).astype(jnp.float16)


# ---------------------------------- main -------------------------------------
if __name__ == "__main__":
    key = jax.random.PRNGKey(0)
    kx, kq, kk, kv, ko = jax.random.split(key, 5)

    init = lambda k, shp: (jax.random.normal(k, shp, jnp.float32) * 0.02).astype(jnp.float16)
    wq = init(kq, (HIDDEN, N_HEADS_Q * HEAD_DIM))
    wk = init(kk, (HIDDEN, N_KV_HEADS * HEAD_DIM))
    wv = init(kv, (HIDDEN, N_KV_HEADS * HEAD_DIM))
    wo = init(ko, (N_HEADS_Q * HEAD_DIM, HIDDEN))

    x = jax.random.normal(kx, (BATCH, SEQ, HIDDEN), jnp.float32).astype(jnp.float16)

    # Rotary position embeddings (rotate-half convention), positions [START_POS, START_POS+SEQ)
    pos = jnp.arange(START_POS, START_POS + SEQ, dtype=jnp.float32)
    inv_freq = 1.0 / (ROPE_THETA ** (jnp.arange(0, HEAD_DIM, 2, dtype=jnp.float32) / HEAD_DIM))
    angles = pos[:, None] * inv_freq[None, :]                           # (S, D/2)
    cos = jnp.concatenate([jnp.cos(angles), jnp.cos(angles)], axis=-1)  # (S, D)
    sin = jnp.concatenate([jnp.sin(angles), jnp.sin(angles)], axis=-1)  # (S, D)

    # Causal additive mask (S, T) — used only by the pure-JAX reference;
    # the kernel generates it in-kernel with iota.
    q_pos = jnp.arange(SEQ)[:, None] + START_POS
    k_pos = jnp.arange(TOTAL)[None, :]
    mask = jnp.where(k_pos <= q_pos, 0.0, -1e9).astype(jnp.float32)

    # One-time weight / table prep (outside the jitted hot path).
    wqkv_p, wo_p, rot_p, cossin_p = prepare_params(wq, wk, wv, wo, cos, sin)

    out = fused_attention(x, wqkv_p, wo_p, rot_p, cossin_p)
    out = jax.block_until_ready(out)

    ref = reference(x, wq, wk, wv, wo, cos, sin, mask)
    assert out.shape == (BATCH, SEQ, HIDDEN) and out.dtype == jnp.float16
    assert jnp.allclose(out.astype(jnp.float32), ref.astype(jnp.float32),
                        atol=1e-2, rtol=1e-2), "mismatch vs reference"

    print("KERNEL_OK")
</pallas_src>

<mosaic_0001>
module attributes {stable_mosaic.version = 11 : i64} {
  func.func @fused_attention_kernel(%arg0: i32, %arg1: memref<16x32xbf16, #tpu.memory_space<vmem>>, %arg2: memref<32x96xbf16, #tpu.memory_space<vmem>>, %arg3: memref<32x32xbf16, #tpu.memory_space<vmem>>, %arg4: memref<64x64xbf16, #tpu.memory_space<vmem>>, %arg5: memref<16x128xf32, #tpu.memory_space<vmem>>, %arg6: memref<16x32xf32, #tpu.memory_space<vmem>>) attributes {dimension_semantics = [#tpu.dimension_semantics<arbitrary>], iteration_bounds = array<i64: 1>, scalar_prefetch = 0 : i64, scratch_operands = 0 : i64, tpu.core_type = #tpu.core_type<tc>, window_params = [{pipeline_mode = #tpu.pipeline_mode<synchronous>, transform_indices = @transform_0, window_bounds = array<i64: 16, 32>}, {pipeline_mode = #tpu.pipeline_mode<synchronous>, transform_indices = @transform_1, window_bounds = array<i64: 32, 96>}, {pipeline_mode = #tpu.pipeline_mode<synchronous>, transform_indices = @transform_2, window_bounds = array<i64: 32, 32>}, {pipeline_mode = #tpu.pipeline_mode<synchronous>, transform_indices = @transform_3, window_bounds = array<i64: 64, 64>}, {pipeline_mode = #tpu.pipeline_mode<synchronous>, transform_indices = @transform_4, window_bounds = array<i64: 16, 128>}, {pipeline_mode = #tpu.pipeline_mode<synchronous>, transform_indices = @transform_5, window_bounds = array<i64: 16, 32>}]} {
    %c0 = arith.constant 0 : index
    %c0_0 = arith.constant 0 : index
    %0 = vector.load %arg1[%c0, %c0_0] : memref<16x32xbf16, #tpu.memory_space<vmem>>, vector<16x32xbf16>
    %c0_1 = arith.constant 0 : index
    %c0_2 = arith.constant 0 : index
    %1 = vector.load %arg2[%c0_1, %c0_2] : memref<32x96xbf16, #tpu.memory_space<vmem>>, vector<32x96xbf16>
    %cst = arith.constant dense<0.000000e+00> : vector<16x96xf32>
    %2 = tpu.matmul %0, %1, %cst {dimension_numbers = #tpu.dot_dimension_numbers<[1], [0], [0], [1], [0, 0, 1, 1], [], []>} : vector<16x32xbf16>, vector<32x96xbf16>, vector<16x96xf32> -> vector<16x96xf32>
    %3 = vector.extract_strided_slice %2 {offsets = [0, 0], sizes = [16, 64], strides = [1, 1]} : vector<16x96xf32> to vector<16x64xf32>
    %4 = arith.truncf %3 : vector<16x64xf32> to vector<16x64xbf16>
    %c0_3 = arith.constant 0 : index
    %c0_4 = arith.constant 0 : index
    %5 = vector.load %arg4[%c0_3, %c0_4] : memref<64x64xbf16, #tpu.memory_space<vmem>>, vector<64x64xbf16>
    %cst_5 = arith.constant dense<0.000000e+00> : vector<16x64xf32>
    %6 = tpu.matmul %4, %5, %cst_5 {dimension_numbers = #tpu.dot_dimension_numbers<[1], [0], [0], [1], [0, 0, 1, 1], [], []>} : vector<16x64xbf16>, vector<64x64xbf16>, vector<16x64xf32> -> vector<16x64xf32>
    %c0_6 = arith.constant 0 : index
    %c0_7 = arith.constant 0 : index
    %7 = vector.load %arg5[%c0_6, %c0_7] : memref<16x128xf32, #tpu.memory_space<vmem>>, vector<16x64xf32>
    %c0_8 = arith.constant 0 : index
    %c64 = arith.constant 64 : index
    %8 = vector.load %arg5[%c0_8, %c64] : memref<16x128xf32, #tpu.memory_space<vmem>>, vector<16x64xf32>
    %9 = arith.mulf %3, %7 : vector<16x64xf32>
    %10 = arith.mulf %6, %8 : vector<16x64xf32>
    %11 = arith.addf %9, %10 : vector<16x64xf32>
    %12 = vector.extract_strided_slice %2 {offsets = [0, 64], sizes = [16, 32], strides = [1, 1]} : vector<16x96xf32> to vector<16x32xf32>
    %13 = tpu.iota {dimensions = array<i32: 1>} : vector<8x32xi32>
    %c0_i32 = arith.constant 0 : i32
    %14 = vector.broadcast %c0_i32 : i32 to vector<8x32xi32>
    %15 = arith.cmpi sge, %13, %14 : vector<8x32xi32>
    %c8_i32 = arith.constant 8 : i32
    %16 = vector.broadcast %c8_i32 : i32 to vector<8x32xi32>
    %17 = arith.cmpi slt, %13, %16 : vector<8x32xi32>
    %18 = arith.andi %15, %17 : vector<8x32xi1>
    %c8_i32_9 = arith.constant 8 : i32
    %19 = vector.broadcast %c8_i32_9 : i32 to vector<8x32xi32>
    %20 = arith.cmpi sge, %13, %19 : vector<8x32xi32>
    %c16_i32 = arith.constant 16 : i32
    %21 = vector.broadcast %c16_i32 : i32 to vector<8x32xi32>
    %22 = arith.cmpi slt, %13, %21 : vector<8x32xi32>
    %23 = arith.andi %20, %22 : vector<8x32xi1>
    %c16_i32_10 = arith.constant 16 : i32
    %24 = vector.broadcast %c16_i32_10 : i32 to vector<8x32xi32>
    %25 = arith.cmpi sge, %13, %24 : vector<8x32xi32>
    %c24_i32 = arith.constant 24 : i32
    %26 = vector.broadcast %c24_i32 : i32 to vector<8x32xi32>
    %27 = arith.cmpi slt, %13, %26 : vector<8x32xi32>
    %28 = arith.andi %25, %27 : vector<8x32xi1>
    %c24_i32_11 = arith.constant 24 : i32
    %29 = vector.broadcast %c24_i32_11 : i32 to vector<8x32xi32>
    %30 = arith.cmpi sge, %13, %29 : vector<8x32xi32>
    %c32_i32 = arith.constant 32 : i32
    %31 = vector.broadcast %c32_i32 : i32 to vector<8x32xi32>
    %32 = arith.cmpi slt, %13, %31 : vector<8x32xi32>
    %33 = arith.andi %30, %32 : vector<8x32xi1>
    %34 = tpu.concatenate %18, %23, %28, %33 in 0 : vector<8x32xi1>, vector<8x32xi1>, vector<8x32xi1>, vector<8x32xi1> -> vector<32x32xi1>
    %35 = tpu.iota {dimensions = array<i32: 0>} : vector<8x8xi32>
    %36 = tpu.iota {dimensions = array<i32: 1>} : vector<8x8xi32>
    %c0_i32_12 = arith.constant 0 : i32
    %37 = vector.broadcast %c0_i32_12 : i32 to vector<8x8xi32>
    %38 = arith.addi %35, %37 : vector<8x8xi32>
    %39 = arith.cmpi sle, %36, %38 : vector<8x8xi32>
    %cst_13 = arith.constant 0.000000e+00 : f32
    %cst_14 = arith.constant -1.000000e+09 : f32
    %40 = vector.broadcast %cst_13 : f32 to vector<8x8xf32>
    %41 = vector.broadcast %cst_14 : f32 to vector<8x8xf32>
    %42 = arith.select %39, %40, %41 : vector<8x8xi1>, vector<8x8xf32>
    %43 = tpu.concatenate %42, %42, %42, %42 in 0 : vector<8x8xf32>, vector<8x8xf32>, vector<8x8xf32>, vector<8x8xf32> -> vector<32x8xf32>
    %44 = vector.extract_strided_slice %11 {offsets = [0, 0], sizes = [8, 32], strides = [1, 1]} : vector<16x64xf32> to vector<8x32xf32>
    %45 = vector.extract_strided_slice %11 {offsets = [0, 32], sizes = [8, 32], strides = [1, 1]} : vector<16x64xf32> to vector<8x32xf32>
    %46 = arith.truncf %45 : vector<8x32xf32> to vector<8x32xbf16>
    %47 = vector.extract_strided_slice %12 {offsets = [0, 0], sizes = [8, 32], strides = [1, 1]} : vector<16x32xf32> to vector<8x32xf32>
    %48 = arith.truncf %47 : vector<8x32xf32> to vector<8x32xbf16>
    %49 = tpu.concatenate %44, %44, %44, %44 in 0 : vector<8x32xf32>, vector<8x32xf32>, vector<8x32xf32>, vector<8x32xf32> -> vector<32x32xf32>
    %cst_15 = arith.constant 0.000000e+00 : f32
    %50 = vector.broadcast %cst_15 : f32 to vector<32x32xf32>
    %51 = arith.select %34, %49, %50 : vector<32x32xi1>, vector<32x32xf32>
    %52 = arith.truncf %51 : vector<32x32xf32> to vector<32x32xbf16>
    %cst_16 = arith.constant dense<0.000000e+00> : vector<32x8xf32>
    %53 = tpu.matmul %52, %46, %cst_16 {dimension_numbers = #tpu.dot_dimension_numbers<[1], [1], [0], [0], [0, 0, 1, 0], [], []>} : vector<32x32xbf16>, vector<8x32xbf16>, vector<32x8xf32> -> vector<32x8xf32>
    %54 = arith.addf %53, %43 : vector<32x8xf32>
    %cst_17 = arith.constant dense<0xFF800000> : vector<32xf32>
    %55 = vector.multi_reduction <maximumf>, %54, %cst_17 [1] : vector<32x8xf32> to vector<32xf32>
    %56 = vector.shape_cast %55 : vector<32xf32> to vector<32x1xf32>
    %57 = vector.broadcast %56 : vector<32x1xf32> to vector<32x8xf32>
    %58 = arith.subf %54, %57 : vector<32x8xf32>
    %59 = math.exp %58 : vector<32x8xf32>
    %cst_18 = arith.constant dense<0.000000e+00> : vector<32xf32>
    %60 = vector.multi_reduction <add>, %59, %cst_18 [1] : vector<32x8xf32> to vector<32xf32>
    %61 = vector.shape_cast %60 : vector<32xf32> to vector<32x1xf32>
    %62 = tpu.reciprocal %61 {approx = true} : vector<32x1xf32> -> vector<32x1xf32>
    %63 = vector.broadcast %62 : vector<32x1xf32> to vector<32x8xf32>
    %64 = arith.mulf %59, %63 : vector<32x8xf32>
    %65 = arith.truncf %64 : vector<32x8xf32> to vector<32x8xbf16>
    %cst_19 = arith.constant dense<0.000000e+00> : vector<32x32xf32>
    %66 = tpu.matmul %65, %48, %cst_19 {dimension_numbers = #tpu.dot_dimension_numbers<[1], [0], [0], [1], [0, 0, 1, 1], [], []>} : vector<32x8xbf16>, vector<8x32xbf16>, vector<32x32xf32> -> vector<32x32xf32>
    %cst_20 = arith.constant 0.000000e+00 : f32
    %67 = vector.broadcast %cst_20 : f32 to vector<32x32xf32>
    %68 = arith.select %34, %66, %67 : vector<32x32xi1>, vector<32x32xf32>
    %69 = vector.extract_strided_slice %68 {offsets = [0, 0], sizes = [8, 32], strides = [1, 1]} : vector<32x32xf32> to vector<8x32xf32>
    %70 = vector.extract_strided_slice %68 {offsets = [8, 0], sizes = [8, 32], strides = [1, 1]} : vector<32x32xf32> to vector<8x32xf32>
    %71 = arith.addf %69, %70 : vector<8x32xf32>
    %72 = vector.extract_strided_slice %68 {offsets = [16, 0], sizes = [8, 32], strides = [1, 1]} : vector<32x32xf32> to vector<8x32xf32>
    %73 = arith.addf %71, %72 : vector<8x32xf32>
    %74 = vector.extract_strided_slice %68 {offsets = [24, 0], sizes = [8, 32], strides = [1, 1]} : vector<32x32xf32> to vector<8x32xf32>
    %75 = arith.addf %73, %74 : vector<8x32xf32>
    %76 = vector.extract_strided_slice %11 {offsets = [8, 0], sizes = [8, 32], strides = [1, 1]} : vector<16x64xf32> to vector<8x32xf32>
    %77 = vector.extract_strided_slice %11 {offsets = [8, 32], sizes = [8, 32], strides = [1, 1]} : vector<16x64xf32> to vector<8x32xf32>
    %78 = arith.truncf %77 : vector<8x32xf32> to vector<8x32xbf16>
    %79 = vector.extract_strided_slice %12 {offsets = [8, 0], sizes = [8, 32], strides = [1, 1]} : vector<16x32xf32> to vector<8x32xf32>
    %80 = arith.truncf %79 : vector<8x32xf32> to vector<8x32xbf16>
    %81 = tpu.concatenate %76, %76, %76, %76 in 0 : vector<8x32xf32>, vector<8x32xf32>, vector<8x32xf32>, vector<8x32xf32> -> vector<32x32xf32>
    %cst_21 = arith.constant 0.000000e+00 : f32
    %82 = vector.broadcast %cst_21 : f32 to vector<32x32xf32>
    %83 = arith.select %34, %81, %82 : vector<32x32xi1>, vector<32x32xf32>
    %84 = arith.truncf %83 : vector<32x32xf32> to vector<32x32xbf16>
    %cst_22 = arith.constant dense<0.000000e+00> : vector<32x8xf32>
    %85 = tpu.matmul %84, %78, %cst_22 {dimension_numbers = #tpu.dot_dimension_numbers<[1], [1], [0], [0], [0, 0, 1, 0], [], []>} : vector<32x32xbf16>, vector<8x32xbf16>, vector<32x8xf32> -> vector<32x8xf32>
    %86 = arith.addf %85, %43 : vector<32x8xf32>
    %cst_23 = arith.constant dense<0xFF800000> : vector<32xf32>
    %87 = vector.multi_reduction <maximumf>, %86, %cst_23 [1] : vector<32x8xf32> to vector<32xf32>
    %88 = vector.shape_cast %87 : vector<32xf32> to vector<32x1xf32>
    %89 = vector.broadcast %88 : vector<32x1xf32> to vector<32x8xf32>
    %90 = arith.subf %86, %89 : vector<32x8xf32>
    %91 = math.exp %90 : vector<32x8xf32>
    %cst_24 = arith.constant dense<0.000000e+00> : vector<32xf32>
    %92 = vector.multi_reduction <add>, %91, %cst_24 [1] : vector<32x8xf32> to vector<32xf32>
    %93 = vector.shape_cast %92 : vector<32xf32> to vector<32x1xf32>
    %94 = tpu.reciprocal %93 {approx = true} : vector<32x1xf32> -> vector<32x1xf32>
    %95 = vector.broadcast %94 : vector<32x1xf32> to vector<32x8xf32>
    %96 = arith.mulf %91, %95 : vector<32x8xf32>
    %97 = arith.truncf %96 : vector<32x8xf32> to vector<32x8xbf16>
    %cst_25 = arith.constant dense<0.000000e+00> : vector<32x32xf32>
    %98 = tpu.matmul %97, %80, %cst_25 {dimension_numbers = #tpu.dot_dimension_numbers<[1], [0], [0], [1], [0, 0, 1, 1], [], []>} : vector<32x8xbf16>, vector<8x32xbf16>, vector<32x32xf32> -> vector<32x32xf32>
    %cst_26 = arith.constant 0.000000e+00 : f32
    %99 = vector.broadcast %cst_26 : f32 to vector<32x32xf32>
    %100 = arith.select %34, %98, %99 : vector<32x32xi1>, vector<32x32xf32>
    %101 = vector.extract_strided_slice %100 {offsets = [0, 0], sizes = [8, 32], strides = [1, 1]} : vector<32x32xf32> to vector<8x32xf32>
    %102 = vector.extract_strided_slice %100 {offsets = [8, 0], sizes = [8, 32], strides = [1, 1]} : vector<32x32xf32> to vector<8x32xf32>
    %103 = arith.addf %101, %102 : vector<8x32xf32>
    %104 = vector.extract_strided_slice %100 {offsets = [16, 0], sizes = [8, 32], strides = [1, 1]} : vector<32x32xf32> to vector<8x32xf32>
    %105 = arith.addf %103, %104 : vector<8x32xf32>
    %106 = vector.extract_strided_slice %100 {offsets = [24, 0], sizes = [8, 32], strides = [1, 1]} : vector<32x32xf32> to vector<8x32xf32>
    %107 = arith.addf %105, %106 : vector<8x32xf32>
    %108 = tpu.concatenate %75, %107 in 0 : vector<8x32xf32>, vector<8x32xf32> -> vector<16x32xf32>
    %109 = arith.truncf %108 : vector<16x32xf32> to vector<16x32xbf16>
    %c0_27 = arith.constant 0 : index
    %c0_28 = arith.constant 0 : index
    %110 = vector.load %arg3[%c0_27, %c0_28] : memref<32x32xbf16, #tpu.memory_space<vmem>>, vector<32x32xbf16>
    %cst_29 = arith.constant dense<0.000000e+00> : vector<16x32xf32>
    %111 = tpu.matmul %109, %110, %cst_29 {dimension_numbers = #tpu.dot_dimension_numbers<[1], [0], [0], [1], [0, 0, 1, 1], [], []>} : vector<16x32xbf16>, vector<32x32xbf16>, vector<16x32xf32> -> vector<16x32xf32>
    %c0_30 = arith.constant 0 : index
    %c0_31 = arith.constant 0 : index
    %112 = vector.load %arg6[%c0_30, %c0_31] : memref<16x32xf32, #tpu.memory_space<vmem>>, vector<16x32xf32>
    tpu.vector_store %arg6[%c0_30, %c0_31], %111 {strides = array<i32>} : memref<16x32xf32, #tpu.memory_space<vmem>>, vector<16x32xf32>,
    return
  }
  func.func @transform_0(%arg0: i32) -> (i32, i32) {
    %c0_i32 = arith.constant 0 : i32
    %c0_i32_0 = arith.constant 0 : i32
    %c0_i32_1 = arith.constant 0 : i32
    return %c0_i32, %c0_i32_0 : i32, i32
  }
  func.func @transform_1(%arg0: i32) -> (i32, i32) {
    %c0_i32 = arith.constant 0 : i32
    %c0_i32_0 = arith.constant 0 : i32
    %c0_i32_1 = arith.constant 0 : i32
    return %c0_i32, %c0_i32_0 : i32, i32
  }
  func.func @transform_2(%arg0: i32) -> (i32, i32) {
    %c0_i32 = arith.constant 0 : i32
    %c0_i32_0 = arith.constant 0 : i32
    %c0_i32_1 = arith.constant 0 : i32
    return %c0_i32, %c0_i32_0 : i32, i32
  }
  func.func @transform_3(%arg0: i32) -> (i32, i32) {
    %c0_i32 = arith.constant 0 : i32
    %c0_i32_0 = arith.constant 0 : i32
    %c0_i32_1 = arith.constant 0 : i32
    return %c0_i32, %c0_i32_0 : i32, i32
  }
  func.func @transform_4(%arg0: i32) -> (i32, i32) {
    %c0_i32 = arith.constant 0 : i32
    %c0_i32_0 = arith.constant 0 : i32
    %c0_i32_1 = arith.constant 0 : i32
    return %c0_i32, %c0_i32_0 : i32, i32
  }
  func.func @transform_5(%arg0: i32) -> (i32, i32) {
    %c0_i32 = arith.constant 0 : i32
    %c0_i32_0 = arith.constant 0 : i32
    %c0_i32_1 = arith.constant 0 : i32
    return %c0_i32, %c0_i32_0 : i32, i32
  }
}

</mosaic_0001>

<llo_original>
// kernel: fused_attention.1
$region0: #{fused_attention.1}
  #allocation0 [shape = 'u32[]', space=smem, size = 0x4, offset = 0x4, fixed_abs, tag = 'smem constant byte address 0x4 - core index']
  #allocation1 [shape = 'u32[144,128]{1,0:T(1,128)}', space=vmem, size = 0x12000, scoped, tag = 'internal scratch']
  %s0 = inlined_call_operand.vmem [shape: bf16[16,32], index: 0, kind: input, shape index: {}]
  %s1 = inlined_call_operand.vmem [shape: bf16[32,96], index: 1, kind: input, shape index: {}]
  %s2 = inlined_call_operand.hbm [shape: bf16[32,32], index: 2, kind: input, shape index: {}]
  %s3 = inlined_call_operand.hbm [shape: bf16[64,64], index: 3, kind: input, shape index: {}]
  %s4 = inlined_call_operand.hbm [shape: f32[16,128], index: 4, kind: input, shape index: {}]
  %s5 = inlined_call_operand.vmem [shape: f32[16,32], index: 5, kind: output, shape index: {}]
  %s6 = sld [smem:[#allocation0]]
  $region42: #{fused_attention.1} parent=0
    _
  %s8 = ssub.s32 1, %s6
  %s9 = scalar_select 0, %s8, %s6
  $region1: #{fused_attention.1} parent=0
    #allocation2 [shape = 'u8[8192]{0}', space=vmem, size = 0x2000, scoped, tag = 'input window, operand 2, single buffered']
    #allocation3 [shape = 's32[1]{0}', space=sflag, size = 0x4, scoped, tag = 'scoped memory for fused_attention.1']
    #allocation4 [shape = 'u8[16384]{0}', space=vmem, size = 0x4000, scoped, tag = 'input window, operand 3, single buffered']
    #allocation5 [shape = 's32[1]{0}', space=sflag, size = 0x4, scoped, tag = 'scoped memory for fused_attention.1']
    #allocation6 [shape = 'u8[8192]{0}', space=vmem, size = 0x2000, scoped, tag = 'input window, operand 4, single buffered']
    %10 = vsyncpa [#allocation3], 0
    %11 = vsyncpa [#allocation5], 0
    // Predicated region
    $region2: #{fused_attention.1} parent=1 // pred_check
      _
    $region3: #{fused_attention.1} parent=1 // pred_check_branch
      %13 = sbr.rel (0) target = $region5
    $region4: #{fused_attention.1} parent=1 // pred_region
      _
    $region5: #{fused_attention.1} parent=1 // pred_fallthru
      _
    // Predicated region
    $region6: #{fused_attention.1} parent=1 // pred_check
      _
    $region7: #{fused_attention.1} parent=1 // pred_check_branch
      %15 = sbr.rel (0) target = $region9
    $region8: #{fused_attention.1} parent=1 // pred_region
      _
    $region9: #{fused_attention.1} parent=1 // pred_fallthru
      _
    // Predicated region
    $region10: #{fused_attention.1} parent=1 // pred_check
      _
    $region11: #{fused_attention.1} parent=1 // pred_check_branch
      %17 = sbr.rel (0) target = $region13
    $region12: #{fused_attention.1} parent=1 // pred_region
      %s19 = ssub.s32 256, 256
      %20 = vsyncadd [#allocation3], %s19
      %s21 = sshll.u32 [#allocation2], 4
      %s22 = int_to_ptr.vmem [resolvable:$true] %s21
      %27 = dma.hbm_to_vmem [thread:$0]  %s2, 256, %s22, [#allocation3], 64, 64, 4
    $region13: #{fused_attention.1} parent=1 // pred_fallthru
      _
    // Predicated region
    $region14: #{fused_attention.1} parent=1 // pred_check
      _
    $region15: #{fused_attention.1} parent=1 // pred_check_branch
      %29 = sbr.rel (0) target = $region17
    $region16: #{fused_attention.1} parent=1 // pred_region
      %s31 = ssub.s32 512, 512
      %32 = vsyncadd [#allocation5], %s31
      %s33 = sshll.u32 [#allocation4], 4
      %s34 = int_to_ptr.vmem [resolvable:$true] %s33
      %39 = dma.hbm_to_vmem [thread:$0]  %s3, 512, %s34, [#allocation5], 64, 64, 4
    $region17: #{fused_attention.1} parent=1 // pred_fallthru
      _
    // Predicated region
    $region18: #{fused_attention.1} parent=1 // pred_check
      _
    $region19: #{fused_attention.1} parent=1 // pred_check_branch
      %41 = sbr.rel (0) target = $region21
    $region20: #{fused_attention.1} parent=1 // pred_region
      %s43 = ssub.s32 256, 256
      %44 = vsyncadd [#allocation5], %s43
      %s45 = sshll.u32 [#allocation6], 4
      %s46 = int_to_ptr.vmem [resolvable:$true] %s45
      %51 = dma.hbm_to_vmem [thread:$0]  %s4, 256, %s46, [#allocation5], 128, 128, 8
    $region21: #{fused_attention.1} parent=1 // pred_fallthru
      _
    // Predicated region
    $region22: #{fused_attention.1} parent=1 // pred_check
      _
    $region23: #{fused_attention.1} parent=1 // pred_check_branch
      %53 = sbr.rel (0) target = $region25
    $region24: #{fused_attention.1} parent=1 // pred_region
      %54 = dma.done [#allocation3], 256
    $region25: #{fused_attention.1} parent=1 // pred_fallthru
      _
    // Predicated region
    $region26: #{fused_attention.1} parent=1 // pred_check
      _
    $region27: #{fused_attention.1} parent=1 // pred_check_branch
      %56 = sbr.rel (0) target = $region29
    $region28: #{fused_attention.1} parent=1 // pred_region
      %57 = dma.done [#allocation5], 512
    $region29: #{fused_attention.1} parent=1 // pred_fallthru
      _
    // Predicated region
    $region30: #{fused_attention.1} parent=1 // pred_check
      _
    $region31: #{fused_attention.1} parent=1 // pred_check_branch
      %59 = sbr.rel (0) target = $region33
    $region32: #{fused_attention.1} parent=1 // pred_region
      %60 = dma.done [#allocation5], 256
    $region33: #{fused_attention.1} parent=1 // pred_fallthru
      _
    %v62 = vld [vmem:[%s0] sm:$0xf]
    %v63 = vld [vmem:[%s0 + $0x4] sm:$0xf]
    %v64 = vld [vmem:[%s1] sm:$0xf]
    %v65 = vld [vmem:[%s1 + $0x4] sm:$0xf]
    %v66 = vld [vmem:[%s1 + $0x8] sm:$0xf]
    %v67 = vld [vmem:[%s1 + $0xc] sm:$0xf]
    %v70 = vunpack.c.l.b16 %v62
    %v71 = vunpack.c.l.b16 %v63
    %v72 = vpack.c.b16 %v71, %v70
    %v77 = vunpack.c.l.b16 %v64
    %v78 = vunpack.c.l.b16 %v65
    %v79 = vunpack.c.l.b16 %v66
    %v80 = vunpack.c.l.b16 %v67
    %v81 = vpack.c.b16 %v78, %v77
    %v82 = vpack.c.b16 %v80, %v79
    %vm85 = vcmask 261120
    %v87 = vsel %vm85, %v72, 0
    %89 = vmatprep.subr.bf16.mxu0 0
    %90 = vmatpush1.bf16.msra.mxu0 %v81
    %91 = vmatprep.subr.bf16.mxu0 0
    %92 = vmatpush1.bf16.msra.mxu0 %v82
    %93 = vmatprep.subr.bf16.mxu0 0
    %94 = vmatpush1.bf16.msra.mxu0 0
    %95 = vmatprep.subr.bf16.mxu0 0
    %96 = vmatpush1.bf16.msra.mxu0 0
    %97 = vmatprep.subr.bf16.mxu0 0
    %98 = vmatpush1.bf16.msra.mxu0 0
    %99 = vmatprep.subr.bf16.mxu0 0
    %100 = vmatpush1.bf16.msra.mxu0 0
    %101 = vmatprep.subr.bf16.mxu0 0
    %102 = vmatpush1.bf16.msra.mxu0 0
    %103 = vmatprep.subr.bf16.mxu0 0
    %104 = vmatpush1.bf16.msra.mxu0 0
    %105 = vmatprep.subr.bf16.mxu0 0
    %106 = vmatpush1.bf16.msra.mxu0 0
    %107 = vmatprep.subr.bf16.mxu0 0
    %108 = vmatpush1.bf16.msra.mxu0 0
    %109 = vmatprep.subr.bf16.mxu0 0
    %110 = vmatpush1.bf16.msra.mxu0 0
    %111 = vmatprep.subr.bf16.mxu0 0
    %112 = vmatpush1.bf16.msra.mxu0 0
    %113 = vmatprep.subr.bf16.mxu0 0
    %114 = vmatpush1.bf16.msra.mxu0 0
    %115 = vmatprep.subr.bf16.mxu0 0
    %116 = vmatpush1.bf16.msra.mxu0 0
    %117 = vmatprep.subr.bf16.mxu0 0
    %118 = vmatpush1.bf16.msra.mxu0 0
    %119 = vmatprep.subr.bf16.mxu0 0
    %120 = vmatpush1.bf16.msra.mxu0 0
    %121 = vmatprep.mubr.bf16.mxu0 0
    %122 = vmatmul.mubr.bf16.gmra.mrb[0].mxu0 %v87
    %v123 = vpop.f32.mrb[0].mxu0
    %v124 = vadd.f32 0.0, %v123
    %v125 = vpop.f32.mrb[0].mxu0
    %v126 = vpop.f32.mrb[0].mxu0
    %v127 = vadd.f32 0.0, %v126
    %v128 = vpop.f32.mrb[0].mxu0
    %129 = vdwg.mxu0
    %v130 = vpack.c.bf16 %v127, %v124
    %v131 = vld [vmem:[#allocation4] sm:$0xf]
    %v132 = vld [vmem:[#allocation4 + $0x4] sm:$0xf]
    %v133 = vld [vmem:[#allocation4 + $0x8] sm:$0xf]
    %v134 = vld [vmem:[#allocation4 + $0xc] sm:$0xf]
    %v135 = vld [vmem:[#allocation4 + $0x10] sm:$0xf]
    %v136 = vld [vmem:[#allocation4 + $0x14] sm:$0xf]
    %v137 = vld [vmem:[#allocation4 + $0x18] sm:$0xf]
    %v138 = vld [vmem:[#allocation4 + $0x1c] sm:$0xf]
    %v147 = vunpack.c.l.b16 %v131
    %v148 = vunpack.c.l.b16 %v132
    %v149 = vunpack.c.l.b16 %v133
    %v150 = vunpack.c.l.b16 %v134
    %v151 = vunpack.c.l.b16 %v135
    %v152 = vunpack.c.l.b16 %v136
    %v153 = vunpack.c.l.b16 %v137
    %v154 = vunpack.c.l.b16 %v138
    %v155 = vpack.c.b16 %v148, %v147
    %v156 = vpack.c.b16 %v150, %v149
    %v157 = vpack.c.b16 %v152, %v151
    %v158 = vpack.c.b16 %v154, %v153
    %vm163 = vcmask 523264
    %v165 = vsel %vm163, %v130, 0
    %167 = vmatprep.subr.bf16.mxu0 0
    %168 = vmatpush1.bf16.msra.mxu0 %v155
    %169 = vmatprep.subr.bf16.mxu0 0
    %170 = vmatpush1.bf16.msra.mxu0 %v156
    %171 = vmatprep.subr.bf16.mxu0 0
    %172 = vmatpush1.bf16.msra.mxu0 %v157
    %173 = vmatprep.subr.bf16.mxu0 0
    %174 = vmatpush1.bf16.msra.mxu0 %v158
    %175 = vmatprep.subr.bf16.mxu0 0
    %176 = vmatpush1.bf16.msra.mxu0 0
    %177 = vmatprep.subr.bf16.mxu0 0
    %178 = vmatpush1.bf16.msra.mxu0 0
    %179 = vmatprep.subr.bf16.mxu0 0
    %180 = vmatpush1.bf16.msra.mxu0 0
    %181 = vmatprep.subr.bf16.mxu0 0
    %182 = vmatpush1.bf16.msra.mxu0 0
    %183 = vmatprep.subr.bf16.mxu0 0
    %184 = vmatpush1.bf16.msra.mxu0 0
    %185 = vmatprep.subr.bf16.mxu0 0
    %186 = vmatpush1.bf16.msra.mxu0 0
    %187 = vmatprep.subr.bf16.mxu0 0
    %188 = vmatpush1.bf16.msra.mxu0 0
    %189 = vmatprep.subr.bf16.mxu0 0
    %190 = vmatpush1.bf16.msra.mxu0 0
    %191 = vmatprep.subr.bf16.mxu0 0
    %192 = vmatpush1.bf16.msra.mxu0 0
    %193 = vmatprep.subr.bf16.mxu0 0
    %194 = vmatpush1.bf16.msra.mxu0 0
    %195 = vmatprep.subr.bf16.mxu0 0
    %196 = vmatpush1.bf16.msra.mxu0 0
    %197 = vmatprep.subr.bf16.mxu0 0
    %198 = vmatpush1.bf16.msra.mxu0 0
    %199 = vmatprep.mubr.bf16.mxu0 0
    %200 = vmatmul.mubr.bf16.gmra.mrb[0].mxu0 %v165
    %v201 = vpop.f32.mrb[0].mxu0
    %v202 = vadd.f32 0.0, %v201
    %v203 = vpop.f32.mrb[0].mxu0
    %v204 = vpop.f32.mrb[0].mxu0
    %v205 = vadd.f32 0.0, %v204
    %v206 = vpop.f32.mrb[0].mxu0
    %207 = vdwg.mxu0
    %v208 = vld [vmem:[#allocation6] sm:$0xff]
    %v209 = vld [vmem:[#allocation6 + $0x8] sm:$0xff]
    %v210 = vmul.f32 %v124, %v208
    %v211 = vmul.f32 %v127, %v209
    %214 = vrot.lane.b32.xlu0 %v208, 64
    %v215 = vpop.permute.xlu0 %214
    %216 = vrot.lane.b32.xlu0 %v209, 64
    %v217 = vpop.permute.xlu0 %216
    %v220 = vmul.f32 %v202, %v215
    %v221 = vmul.f32 %v205, %v217
    %v222 = vadd.f32 %v210, %v220
    %v223 = vadd.f32 %v211, %v221
    %v224 = vlaneseq
    %v225 = vand.u32 %v224, 127
    %vm226 = vcmp.ge.s32.totalorder %v225, 0
    %vm227 = vcmp.lt.s32.totalorder %v225, 8
    %vm228 = vmand %vm226, %vm227
    %vm229 = vcmp.ge.s32.totalorder %v225, 8
    %vm230 = vcmp.lt.s32.totalorder %v225, 16
    %vm231 = vmand %vm229, %vm230
    %vm232 = vcmp.ge.s32.totalorder %v225, 16
    %vm233 = vcmp.lt.s32.totalorder %v225, 24
    %vm234 = vmand %vm232, %vm233
    %vm235 = vcmp.ge.s32.totalorder %v225, 24
    %vm236 = vcmp.lt.s32.totalorder %v225, 32
    %vm237 = vmand %vm235, %vm236
    %v238 = vlaneseq
    %v239 = vshrl.u32 %v238, 7
    %vm240 = vcmp.le.s32.totalorder %v225, %v239
    %v241 = vsel %vm240, 0.0, -1e+09
    %v242 = vpack.c.bf16 %v222, %v222
    %v243 = vpack.c.bf16 %v124, %v124
    %v244 = vsel %vm228, %v222, 0.0
    %v245 = vsel %vm231, %v222, 0.0
    %v246 = vsel %vm234, %v222, 0.0
    %v247 = vsel %vm237, %v222, 0.0
    %v248 = vpack.c.bf16 %v245, %v244
    %v249 = vpack.c.bf16 %v247, %v246
    %251 = vrot.lane.b32.xlu0 %v242, 96
    %v252 = vpop.permute.xlu0 %251
    %v254 = vsel %vm85, %v248, 0
    %v257 = vsel %vm85, %v249, 0
    %v260 = vsel %vm85, %v252, 0
    %262 = vmatprep.subr.bf16.mxu0 0
    %263 = vmatpush1.bf16.xpose.msra.mxu0 %v260
    %264 = vmatprep.subr.bf16.mxu0 0
    %265 = vmatpush1.bf16.xpose.msra.mxu0 0
    %266 = vmatprep.subr.bf16.mxu0 0
    %267 = vmatpush1.bf16.xpose.msra.mxu0 0
    %268 = vmatprep.subr.bf16.mxu0 0
    %269 = vmatpush1.bf16.xpose.msra.mxu0 0
    %270 = vmatprep.subr.bf16.mxu0 0
    %271 = vmatpush1.bf16.xpose.msra.mxu0 0
    %272 = vmatprep.subr.bf16.mxu0 0
    %273 = vmatpush1.bf16.xpose.msra.mxu0 0
    %274 = vmatprep.subr.bf16.mxu0 0
    %275 = vmatpush1.bf16.xpose.msra.mxu0 0
    %276 = vmatprep.subr.bf16.mxu0 0
    %277 = vmatpush1.bf16.xpose.msra.mxu0 0
    %278 = vmatprep.subr.bf16.mxu0 0
    %279 = vmatpush1.bf16.xpose.msra.mxu0 0
    %280 = vmatprep.subr.bf16.mxu0 0
    %281 = vmatpush1.bf16.xpose.msra.mxu0 0
    %282 = vmatprep.subr.bf16.mxu0 0
    %283 = vmatpush1.bf16.xpose.msra.mxu0 0
    %284 = vmatprep.subr.bf16.mxu0 0
    %285 = vmatpush1.bf16.xpose.msra.mxu0 0
    %286 = vmatprep.subr.bf16.mxu0 0
    %287 = vmatpush1.bf16.xpose.msra.mxu0 0
    %288 = vmatprep.subr.bf16.mxu0 0
    %289 = vmatpush1.bf16.xpose.msra.mxu0 0
    %290 = vmatprep.subr.bf16.mxu0 0
    %291 = vmatpush1.bf16.xpose.msra.mxu0 0
    %292 = vmatprep.subr.bf16.mxu0 0
    %293 = vmatpush1.bf16.xpose.msra.mxu0 0
    %294 = vmatprep.mubr.bf16.mxu0 0
    %295 = vmatmul.mubr.bf16.gmra.mrb[0].mxu0 %v254
    %v296 = vpop.f32.mrb[0].mxu0
    %v297 = vadd.f32 %v241, %v296
    %v298 = vpop.f32.mrb[0].mxu0
    %v299 = vpop.f32.mrb[0].mxu0
    %v300 = vadd.f32 %v241, %v299
    %v301 = vpop.f32.mrb[0].mxu0
    %302 = vmatprep.mubr.bf16.mxu0 0
    %303 = vmatmul.mubr.bf16.gmra.mrb[0].mxu0 %v257
    %v304 = vpop.f32.mrb[0].mxu0
    %v305 = vadd.f32 %v241, %v304
    %v306 = vpop.f32.mrb[0].mxu0
    %v307 = vpop.f32.mrb[0].mxu0
    %v308 = vadd.f32 %v241, %v307
    %v309 = vpop.f32.mrb[0].mxu0
    %310 = vdwg.mxu0
    %vm311 = vcmask 64512
    %v312 = vsel %vm311, %v297, -inf
    %313 = vmax.xlane.f32.xlu0 %v312
    %v314 = vpop.xlane.xlu0 %313
    %v315 = vsel %vm311, %v300, -inf
    %316 = vmax.xlane.f32.xlu0 %v315
    %v317 = vpop.xlane.xlu0 %316
    %v318 = vsel %vm311, %v305, -inf
    %319 = vmax.xlane.f32.xlu0 %v318
    %v320 = vpop.xlane.xlu0 %319
    %v321 = vsel %vm311, %v308, -inf
    %322 = vmax.xlane.f32.xlu0 %v321
    %v323 = vpop.xlane.xlu0 %322
    %v324 = vsub.f32 %v297, %v314
    %v325 = vsub.f32 %v300, %v317
    %v326 = vsub.f32 %v305, %v320
    %v327 = vsub.f32 %v308, %v323
    %v328 = vmul.f32 %v324, 1.442695
    %v329 = vpow.pop %v328
    %v330 = vmul.f32 %v325, 1.442695
    %v331 = vpow.pop %v330
    %v332 = vmul.f32 %v326, 1.442695
    %v333 = vpow.pop %v332
    %v334 = vmul.f32 %v327, 1.442695
    %v335 = vpow.pop %v334
    %v336 = vsel %vm311, %v329, 0.0
    %337 = vadd.xlane.f32.xlu0 %v336
    %v338 = vpop.xlane.xlu0 %337
    %v339 = vsel %vm311, %v331, 0.0
    %340 = vadd.xlane.f32.xlu0 %v339
    %v341 = vpop.xlane.xlu0 %340
    %v342 = vsel %vm311, %v333, 0.0
    %343 = vadd.xlane.f32.xlu0 %v342
    %v344 = vpop.xlane.xlu0 %343
    %v345 = vsel %vm311, %v335, 0.0
    %346 = vadd.xlane.f32.xlu0 %v345
    %v347 = vpop.xlane.xlu0 %346
    %v348 = vrcp.pop %v338
    %v349 = vrcp.pop %v341
    %v350 = vrcp.pop %v344
    %v351 = vrcp.pop %v347
    %v352 = vmul.f32 %v329, %v348
    %v353 = vmul.f32 %v331, %v349
    %v354 = vmul.f32 %v333, %v350
    %v355 = vmul.f32 %v335, %v351
    %v356 = vpack.c.bf16 %v353, %v352
    %v357 = vpack.c.bf16 %v355, %v354
    %359 = vrot.lane.b32.xlu0 %v243, 64
    %v360 = vpop.permute.xlu0 %359
    %v362 = vsel %vm311, %v356, 0
    %v365 = vsel %vm311, %v357, 0
    %vm367 = vcmask 1043456
    %v369 = vsel %vm367, %v360, 0
    %371 = vmatprep.subr.bf16.mxu0 0
    %372 = vmatpush1.bf16.msra.mxu0 %v369
    %373 = vmatprep.subr.bf16.mxu0 0
    %374 = vmatpush1.bf16.msra.mxu0 0
    %375 = vmatprep.subr.bf16.mxu0 0
    %376 = vmatpush1.bf16.msra.mxu0 0
    %377 = vmatprep.subr.bf16.mxu0 0
    %378 = vmatpush1.bf16.msra.mxu0 0
    %379 = vmatprep.subr.bf16.mxu0 0
    %380 = vmatpush1.bf16.msra.mxu0 0
    %381 = vmatprep.subr.bf16.mxu0 0
    %382 = vmatpush1.bf16.msra.mxu0 0
    %383 = vmatprep.subr.bf16.mxu0 0
    %384 = vmatpush1.bf16.msra.mxu0 0
    %385 = vmatprep.subr.bf16.mxu0 0
    %386 = vmatpush1.bf16.msra.mxu0 0
    %387 = vmatprep.subr.bf16.mxu0 0
    %388 = vmatpush1.bf16.msra.mxu0 0
    %389 = vmatprep.subr.bf16.mxu0 0
    %390 = vmatpush1.bf16.msra.mxu0 0
    %391 = vmatprep.subr.bf16.mxu0 0
    %392 = vmatpush1.bf16.msra.mxu0 0
    %393 = vmatprep.subr.bf16.mxu0 0
    %394 = vmatpush1.bf16.msra.mxu0 0
    %395 = vmatprep.subr.bf16.mxu0 0
    %396 = vmatpush1.bf16.msra.mxu0 0
    %397 = vmatprep.subr.bf16.mxu0 0
    %398 = vmatpush1.bf16.msra.mxu0 0
    %399 = vmatprep.subr.bf16.mxu0 0
    %400 = vmatpush1.bf16.msra.mxu0 0
    %401 = vmatprep.subr.bf16.mxu0 0
    %402 = vmatpush1.bf16.msra.mxu0 0
    %403 = vmatprep.mubr.bf16.mxu0 0
    %404 = vmatmul.mubr.bf16.gmra.mrb[0].mxu0 %v362
    %v405 = vpop.f32.mrb[0].mxu0
    %v406 = vadd.f32 0.0, %v405
    %v407 = vpop.f32.mrb[0].mxu0
    %v408 = vpop.f32.mrb[0].mxu0
    %v409 = vadd.f32 0.0, %v408
    %v410 = vpop.f32.mrb[0].mxu0
    %411 = vmatprep.mubr.bf16.mxu0 0
    %412 = vmatmul.mubr.bf16.gmra.mrb[0].mxu0 %v365
    %v413 = vpop.f32.mrb[0].mxu0
    %v414 = vadd.f32 0.0, %v413
    %v415 = vpop.f32.mrb[0].mxu0
    %v416 = vpop.f32.mrb[0].mxu0
    %v417 = vadd.f32 0.0, %v416
    %v418 = vpop.f32.mrb[0].mxu0
    %419 = vdwg.mxu0
    %v420 = vsel %vm228, %v406, 0.0
    %v421 = vsel %vm231, %v409, 0.0
    %v422 = vsel %vm234, %v414, 0.0
    %v423 = vsel %vm237, %v417, 0.0
    %v424 = vadd.f32 %v420, %v421
    %v425 = vadd.f32 %v424, %v422
    %v426 = vadd.f32 %v425, %v423
    %v427 = vpack.c.bf16 %v223, %v223
    %v428 = vpack.c.bf16 %v127, %v127
    %v429 = vsel %vm228, %v223, 0.0
    %v430 = vsel %vm231, %v223, 0.0
    %v431 = vsel %vm234, %v223, 0.0
    %v432 = vsel %vm237, %v223, 0.0
    %v433 = vpack.c.bf16 %v430, %v429
    %v434 = vpack.c.bf16 %v432, %v431
    %436 = vrot.lane.b32.xlu0 %v427, 96
    %v437 = vpop.permute.xlu0 %436
    %v439 = vsel %vm85, %v433, 0
    %v442 = vsel %vm85, %v434, 0
    %v445 = vsel %vm85, %v437, 0
    %447 = vmatprep.subr.bf16.mxu0 0
    %448 = vmatpush1.bf16.xpose.msra.mxu0 %v445
    %449 = vmatprep.subr.bf16.mxu0 0
    %450 = vmatpush1.bf16.xpose.msra.mxu0 0
    %451 = vmatprep.subr.bf16.mxu0 0
    %452 = vmatpush1.bf16.xpose.msra.mxu0 0
    %453 = vmatprep.subr.bf16.mxu0 0
    %454 = vmatpush1.bf16.xpose.msra.mxu0 0
    %455 = vmatprep.subr.bf16.mxu0 0
    %456 = vmatpush1.bf16.xpose.msra.mxu0 0
    %457 = vmatprep.subr.bf16.mxu0 0
    %458 = vmatpush1.bf16.xpose.msra.mxu0 0
    %459 = vmatprep.subr.bf16.mxu0 0
    %460 = vmatpush1.bf16.xpose.msra.mxu0 0
    %461 = vmatprep.subr.bf16.mxu0 0
    %462 = vmatpush1.bf16.xpose.msra.mxu0 0
    %463 = vmatprep.subr.bf16.mxu0 0
    %464 = vmatpush1.bf16.xpose.msra.mxu0 0
    %465 = vmatprep.subr.bf16.mxu0 0
    %466 = vmatpush1.bf16.xpose.msra.mxu0 0
    %467 = vmatprep.subr.bf16.mxu0 0
    %468 = vmatpush1.bf16.xpose.msra.mxu0 0
    %469 = vmatprep.subr.bf16.mxu0 0
    %470 = vmatpush1.bf16.xpose.msra.mxu0 0
    %471 = vmatprep.subr.bf16.mxu0 0
    %472 = vmatpush1.bf16.xpose.msra.mxu0 0
    %473 = vmatprep.subr.bf16.mxu0 0
    %474 = vmatpush1.bf16.xpose.msra.mxu0 0
    %475 = vmatprep.subr.bf16.mxu0 0
    %476 = vmatpush1.bf16.xpose.msra.mxu0 0
    %477 = vmatprep.subr.bf16.mxu0 0
    %478 = vmatpush1.bf16.xpose.msra.mxu0 0
    %479 = vmatprep.mubr.bf16.mxu0 0
    %480 = vmatmul.mubr.bf16.gmra.mrb[0].mxu0 %v439
    %v481 = vpop.f32.mrb[0].mxu0
    %v482 = vadd.f32 %v241, %v481
    %v483 = vpop.f32.mrb[0].mxu0
    %v484 = vpop.f32.mrb[0].mxu0
    %v485 = vadd.f32 %v241, %v484
    %v486 = vpop.f32.mrb[0].mxu0
    %487 = vmatprep.mubr.bf16.mxu0 0
    %488 = vmatmul.mubr.bf16.gmra.mrb[0].mxu0 %v442
    %v489 = vpop.f32.mrb[0].mxu0
    %v490 = vadd.f32 %v241, %v489
    %v491 = vpop.f32.mrb[0].mxu0
    %v492 = vpop.f32.mrb[0].mxu0
    %v493 = vadd.f32 %v241, %v492
    %v494 = vpop.f32.mrb[0].mxu0
    %495 = vdwg.mxu0
    %v496 = vsel %vm311, %v482, -inf
    %497 = vmax.xlane.f32.xlu0 %v496
    %v498 = vpop.xlane.xlu0 %497
    %v499 = vsel %vm311, %v485, -inf
    %500 = vmax.xlane.f32.xlu0 %v499
    %v501 = vpop.xlane.xlu0 %500
    %v502 = vsel %vm311, %v490, -inf
    %503 = vmax.xlane.f32.xlu0 %v502
    %v504 = vpop.xlane.xlu0 %503
    %v505 = vsel %vm311, %v493, -inf
    %506 = vmax.xlane.f32.xlu0 %v505
    %v507 = vpop.xlane.xlu0 %506
    %v508 = vsub.f32 %v482, %v498
    %v509 = vsub.f32 %v485, %v501
    %v510 = vsub.f32 %v490, %v504
    %v511 = vsub.f32 %v493, %v507
    %v512 = vmul.f32 %v508, 1.442695
    %v513 = vpow.pop %v512
    %v514 = vmul.f32 %v509, 1.442695
    %v515 = vpow.pop %v514
    %v516 = vmul.f32 %v510, 1.442695
    %v517 = vpow.pop %v516
    %v518 = vmul.f32 %v511, 1.442695
    %v519 = vpow.pop %v518
    %v520 = vsel %vm311, %v513, 0.0
    %521 = vadd.xlane.f32.xlu0 %v520
    %v522 = vpop.xlane.xlu0 %521
    %v523 = vsel %vm311, %v515, 0.0
    %524 = vadd.xlane.f32.xlu0 %v523
    %v525 = vpop.xlane.xlu0 %524
    %v526 = vsel %vm311, %v517, 0.0
    %527 = vadd.xlane.f32.xlu0 %v526
    %v528 = vpop.xlane.xlu0 %527
    %v529 = vsel %vm311, %v519, 0.0
    %530 = vadd.xlane.f32.xlu0 %v529
    %v531 = vpop.xlane.xlu0 %530
    %v532 = vrcp.pop %v522
    %v533 = vrcp.pop %v525
    %v534 = vrcp.pop %v528
    %v535 = vrcp.pop %v531
    %v536 = vmul.f32 %v513, %v532
    %v537 = vmul.f32 %v515, %v533
    %v538 = vmul.f32 %v517, %v534
    %v539 = vmul.f32 %v519, %v535
    %v540 = vpack.c.bf16 %v537, %v536
    %v541 = vpack.c.bf16 %v539, %v538
    %543 = vrot.lane.b32.xlu0 %v428, 64
    %v544 = vpop.permute.xlu0 %543
    %v546 = vsel %vm311, %v540, 0
    %v549 = vsel %vm311, %v541, 0
    %v552 = vsel %vm367, %v544, 0
    %554 = vmatprep.subr.bf16.mxu0 0
    %555 = vmatpush1.bf16.msra.mxu0 %v552
    %556 = vmatprep.subr.bf16.mxu0 0
    %557 = vmatpush1.bf16.msra.mxu0 0
    %558 = vmatprep.subr.bf16.mxu0 0
    %559 = vmatpush1.bf16.msra.mxu0 0
    %560 = vmatprep.subr.bf16.mxu0 0
    %561 = vmatpush1.bf16.msra.mxu0 0
    %562 = vmatprep.subr.bf16.mxu0 0
    %563 = vmatpush1.bf16.msra.mxu0 0
    %564 = vmatprep.subr.bf16.mxu0 0
    %565 = vmatpush1.bf16.msra.mxu0 0
    %566 = vmatprep.subr.bf16.mxu0 0
    %567 = vmatpush1.bf16.msra.mxu0 0
    %568 = vmatprep.subr.bf16.mxu0 0
    %569 = vmatpush1.bf16.msra.mxu0 0
    %570 = vmatprep.subr.bf16.mxu0 0
    %571 = vmatpush1.bf16.msra.mxu0 0
    %572 = vmatprep.subr.bf16.mxu0 0
    %573 = vmatpush1.bf16.msra.mxu0 0
    %574 = vmatprep.subr.bf16.mxu0 0
    %575 = vmatpush1.bf16.msra.mxu0 0
    %576 = vmatprep.subr.bf16.mxu0 0
    %577 = vmatpush1.bf16.msra.mxu0 0
    %578 = vmatprep.subr.bf16.mxu0 0
    %579 = vmatpush1.bf16.msra.mxu0 0
    %580 = vmatprep.subr.bf16.mxu0 0
    %581 = vmatpush1.bf16.msra.mxu0 0
    %582 = vmatprep.subr.bf16.mxu0 0
    %583 = vmatpush1.bf16.msra.mxu0 0
    %584 = vmatprep.subr.bf16.mxu0 0
    %585 = vmatpush1.bf16.msra.mxu0 0
    %586 = vmatprep.mubr.bf16.mxu0 0
    %587 = vmatmul.mubr.bf16.gmra.mrb[0].mxu0 %v546
    %v588 = vpop.f32.mrb[0].mxu0
    %v589 = vadd.f32 0.0, %v588
    %v590 = vpop.f32.mrb[0].mxu0
    %v591 = vpop.f32.mrb[0].mxu0
    %v592 = vadd.f32 0.0, %v591
    %v593 = vpop.f32.mrb[0].mxu0
    %594 = vmatprep.mubr.bf16.mxu0 0
    %595 = vmatmul.mubr.bf16.gmra.mrb[0].mxu0 %v549
    %v596 = vpop.f32.mrb[0].mxu0
    %v597 = vadd.f32 0.0, %v596
    %v598 = vpop.f32.mrb[0].mxu0
    %v599 = vpop.f32.mrb[0].mxu0
    %v600 = vadd.f32 0.0, %v599
    %v601 = vpop.f32.mrb[0].mxu0
    %602 = vdwg.mxu0
    %v603 = vsel %vm228, %v589, 0.0
    %v604 = vsel %vm231, %v592, 0.0
    %v605 = vsel %vm234, %v597, 0.0
    %v606 = vsel %vm237, %v600, 0.0
    %v607 = vadd.f32 %v603, %v604
    %v608 = vadd.f32 %v607, %v605
    %v609 = vadd.f32 %v608, %v606
    %v610 = vpack.c.bf16 %v609, %v426
    %v611 = vld [vmem:[#allocation2] sm:$0xf]
    %v612 = vld [vmem:[#allocation2 + $0x4] sm:$0xf]
    %v613 = vld [vmem:[#allocation2 + $0x8] sm:$0xf]
    %v614 = vld [vmem:[#allocation2 + $0xc] sm:$0xf]
    %v619 = vunpack.c.l.b16 %v611
    %v620 = vunpack.c.l.b16 %v612
    %v621 = vunpack.c.l.b16 %v613
    %v622 = vunpack.c.l.b16 %v614
    %v623 = vpack.c.b16 %v620, %v619
    %v624 = vpack.c.b16 %v622, %v621
    %v628 = vsel %vm85, %v610, 0
    %630 = vmatprep.subr.bf16.mxu0 0
    %631 = vmatpush1.bf16.msra.mxu0 %v623
    %632 = vmatprep.subr.bf16.mxu0 0
    %633 = vmatpush1.bf16.msra.mxu0 %v624
    %634 = vmatprep.subr.bf16.mxu0 0
    %635 = vmatpush1.bf16.msra.mxu0 0
    %636 = vmatprep.subr.bf16.mxu0 0
    %637 = vmatpush1.bf16.msra.mxu0 0
    %638 = vmatprep.subr.bf16.mxu0 0
    %639 = vmatpush1.bf16.msra.mxu0 0
    %640 = vmatprep.subr.bf16.mxu0 0
    %641 = vmatpush1.bf16.msra.mxu0 0
    %642 = vmatprep.subr.bf16.mxu0 0
    %643 = vmatpush1.bf16.msra.mxu0 0
    %644 = vmatprep.subr.bf16.mxu0 0
    %645 = vmatpush1.bf16.msra.mxu0 0
    %646 = vmatprep.subr.bf16.mxu0 0
    %647 = vmatpush1.bf16.msra.mxu0 0
    %648 = vmatprep.subr.bf16.mxu0 0
    %649 = vmatpush1.bf16.msra.mxu0 0
    %650 = vmatprep.subr.bf16.mxu0 0
    %651 = vmatpush1.bf16.msra.mxu0 0
    %652 = vmatprep.subr.bf16.mxu0 0
    %653 = vmatpush1.bf16.msra.mxu0 0
    %654 = vmatprep.subr.bf16.mxu0 0
    %655 = vmatpush1.bf16.msra.mxu0 0
    %656 = vmatprep.subr.bf16.mxu0 0
    %657 = vmatpush1.bf16.msra.mxu0 0
    %658 = vmatprep.subr.bf16.mxu0 0
    %659 = vmatpush1.bf16.msra.mxu0 0
    %660 = vmatprep.subr.bf16.mxu0 0
    %661 = vmatpush1.bf16.msra.mxu0 0
    %662 = vmatprep.mubr.bf16.mxu0 0
    %663 = vmatmul.mubr.bf16.gmra.mrb[0].mxu0 %v628
    %v664 = vpop.f32.mrb[0].mxu0
    %v665 = vadd.f32 0.0, %v664
    %v666 = vpop.f32.mrb[0].mxu0
    %v667 = vpop.f32.mrb[0].mxu0
    %v668 = vadd.f32 0.0, %v667
    %v669 = vpop.f32.mrb[0].mxu0
    %670 = vdwg.mxu0
    %671 = vst.msk [vmem:[%s5] sm:$0xff] %vm85, %v665
    %672 = vst.msk [vmem:[%s5 + $0x8] sm:$0xff] %vm85, %v668
    // Predicated region
    $region34: #{fused_attention.1} parent=1 // pred_check
      _
    $region35: #{fused_attention.1} parent=1 // pred_check_branch
      %674 = sbr.rel (0) target = $region37
    $region36: #{fused_attention.1} parent=1 // pred_region
      _
    $region37: #{fused_attention.1} parent=1 // pred_fallthru
      _
    // Predicated region
    $region38: #{fused_attention.1} parent=1 // pred_check
      _
    $region39: #{fused_attention.1} parent=1 // pred_check_branch
      %676 = sbr.rel (0) target = $region41
    $region40: #{fused_attention.1} parent=1 // pred_region
      _
    $region41: #{fused_attention.1} parent=1 // pred_fallthru
      _
    %677 = vsyncpa [#allocation3], 1
    %678 = vsyncpa [#allocation5], 1

</llo_original>
